<compile_context>
chip_gen: v7x
topology: tpu7x:2x2x1
jax: 0.10.0
libtpu: 0.0.40
codegen_flags: <defaults>
</compile_context>

<pallas_src>
import math

import jax
import jax.numpy as jnp
from jax.experimental import pallas as pl
from jax.experimental.pallas import tpu as pltpu


def _srelu_kernel(x_ref, b_ref, o_ref):
    # x_ref: (tr, W) tile, b_ref: (1, W) replicated/resident bias, o_ref: (tr, W)
    # relu(x - b) + b == max(x, b)
    o_ref[...] = jnp.maximum(x_ref[...], b_ref[...])


_SMALL_INPUT_BYTES = 256 * 1024        # below this, fixed kernel cost dominates
_TARGET_BLOCK_BYTES = 6 * 1024 * 1024  # ~6 MiB tiles amortize per-step overhead
_MAX_LANE_WIDTH = 2048                 # lane-density gains flatten well before this


def srelu(x, bias):
    """Shifted ReLU: relu(x - bias) + bias; bias (nc,) broadcast over last axis."""
    orig_shape = x.shape
    nc = bias.shape[0]
    assert orig_shape[-1] == nc, "channel axis (last) must match bias size"

    dtype = x.dtype
    # NOTE: bias is applied in x's dtype (bf16 x => bf16-rounded bias), matching
    # an all-same-dtype PyTorch module.
    b = bias.astype(dtype)
    itemsize = jnp.dtype(dtype).itemsize
    n_elems = x.size

    # Fast path: tiny activations -- a fused XLA elementwise op beats kernel
    # launch / grid-step fixed overheads (typical EGNN (B, N, hidden) sizes).
    if n_elems * itemsize < _SMALL_INPUT_BYTES:
        return jnp.maximum(x, b)

    # ---- packed width W: multiple of nc (keeps the bias pattern aligned per
    # packed row).  Prefer the largest multiple of lcm(nc, 128) that divides
    # the flat length exactly (unmasked vst AND no pad/slice copy).  If nothing
    # divides, use the natural channel width: full-extent last dim is legal,
    # costs at most a few % of store efficiency, and never adds an HBM pass.
    w0 = (nc * 128) // math.gcd(nc, 128)       # lcm(nc, 128)
    W = nc
    k = 1
    while w0 * k <= min(n_elems, _MAX_LANE_WIDTH):
        if n_elems % (w0 * k) == 0:
            W = w0 * k
        k += 1

    reps = W // nc
    b_row = (jnp.tile(b, reps) if reps > 1 else b).reshape(1, W)

    rows = n_elems // W
    x2 = x.reshape(rows, W)                    # contiguous reshape: no copy

    # ---- dtype-aware row tiling (~_TARGET_BLOCK_BYTES per block) ----
    sublane = {4: 8, 2: 16, 1: 32}.get(itemsize, 8)
    tr = max(sublane, (_TARGET_BLOCK_BYTES // (W * itemsize)) // sublane * sublane)
    if tr >= rows:
        tr = rows                              # single full-extent block (legal)
    grid = (pl.cdiv(rows, tr),)                # partial edge tile handled by Pallas

    # Double-buffered input + output blocks (+ resident bias row).
    live_bytes = 4 * tr * W * itemsize + 2 * W * itemsize
    vmem_limit = min(48 << 20, max(32 << 20, 2 * live_bytes))

    out = pl.pallas_call(
        _srelu_kernel,
        out_shape=jax.ShapeDtypeStruct((rows, W), dtype),
        grid_spec=pltpu.PrefetchScalarGridSpec(
            num_scalar_prefetch=0,
            grid=grid,
            in_specs=[
                pl.BlockSpec((tr, W), lambda i: (i, 0)),
                pl.BlockSpec((1, W), lambda i: (0, 0)),   # bias stays resident
            ],
            out_specs=pl.BlockSpec((tr, W), lambda i: (i, 0)),
        ),
        compiler_params=pltpu.CompilerParams(
            # "parallel" lets v7x shard the row axis across both TensorCores;
            # near-no-op (but harmless) on single-TC v5e/v6e.
            dimension_semantics=("parallel",),
            vmem_limit_bytes=vmem_limit,
        ),
        cost_estimate=pl.CostEstimate(
            flops=n_elems,
            transcendentals=0,
            bytes_accessed=2 * n_elems * itemsize + W * itemsize,
        ),
    )(x2, b_row)

    return out.reshape(orig_shape)


if __name__ == "__main__":
    # Module params: SReLU(nc, bias) -> per-channel bias, constant-initialized.
    nc = 32
    bias_value = -1.0
    srelu_bias = jnp.full((nc,), bias_value, dtype=jnp.float32)
    key = jax.random.PRNGKey(0)

    def ref(x, b):
        return jnp.maximum(x - b, 0.0) + b     # original relu(x - b) + b form

    # (a) Pallas main path: leading dims divide evenly -> lane-dense repack.
    xa = jax.random.normal(key, (4, 1024, nc), dtype=jnp.float32)
    ya = jax.block_until_ready(srelu(xa, srelu_bias))
    assert ya.shape == xa.shape and ya.dtype == xa.dtype
    assert jnp.allclose(ya, ref(xa, srelu_bias), atol=1e-6), "mismatch (main path)"

    # (b) Pallas fallback path: ragged leading dims -> natural (rows, nc) view.
    xb = jax.random.normal(jax.random.fold_in(key, 1), (7, 1237, nc),
                           dtype=jnp.float32)
    yb = jax.block_until_ready(srelu(xb, srelu_bias))
    assert jnp.allclose(yb, ref(xb, srelu_bias), atol=1e-6), "mismatch (ragged path)"

    # (c) Small-input fast path (typical EGNN activation, e.g. batch=2, nodes=8).
    xc = jax.random.normal(jax.random.fold_in(key, 2), (2, 8, nc),
                           dtype=jnp.float32)
    yc = jax.block_until_ready(srelu(xc, srelu_bias))
    assert jnp.allclose(yc, ref(xc, srelu_bias), atol=1e-6), "mismatch (fast path)"

    print("KERNEL_OK")
</pallas_src>

<mosaic_0001>
module attributes {stable_mosaic.version = 11 : i64} {
  func.func @_srelu_kernel(%arg0: i32, %arg1: memref<64x2048xf32, #tpu.memory_space<vmem>>, %arg2: memref<1x2048xf32, #tpu.memory_space<vmem>>, %arg3: memref<64x2048xf32, #tpu.memory_space<vmem>>) attributes {dimension_semantics = [#tpu.dimension_semantics<parallel>], iteration_bounds = array<i64: 1>, scalar_prefetch = 0 : i64, scratch_operands = 0 : i64, tpu.core_type = #tpu.core_type<tc>, window_params = [{transform_indices = @transform_0, window_bounds = array<i64: 64, 2048>}, {pipeline_mode = #tpu.pipeline_mode<synchronous>, transform_indices = @transform_1, window_bounds = array<i64: 1, 2048>}, {transform_indices = @transform_2, window_bounds = array<i64: 64, 2048>}]} {
    %c0 = arith.constant 0 : index
    %c0_0 = arith.constant 0 : index
    %0 = vector.load %arg1[%c0, %c0_0] : memref<64x2048xf32, #tpu.memory_space<vmem>>, vector<64x2048xf32>
    %c0_1 = arith.constant 0 : index
    %c0_2 = arith.constant 0 : index
    %1 = vector.load %arg2[%c0_1, %c0_2] : memref<1x2048xf32, #tpu.memory_space<vmem>>, vector<1x2048xf32>
    %2 = vector.broadcast %1 : vector<1x2048xf32> to vector<64x2048xf32>
    %3 = arith.maximumf %0, %2 : vector<64x2048xf32>
    %c0_3 = arith.constant 0 : index
    %c0_4 = arith.constant 0 : index
    %4 = vector.load %arg3[%c0_3, %c0_4] : memref<64x2048xf32, #tpu.memory_space<vmem>>, vector<64x2048xf32>
    tpu.vector_store %arg3[%c0_3, %c0_4], %3 {strides = array<i32>} : memref<64x2048xf32, #tpu.memory_space<vmem>>, vector<64x2048xf32>,
    return
  }
  func.func @transform_0(%arg0: i32) -> (i32, i32) {
    %c0_i32 = arith.constant 0 : i32
    %c0_i32_0 = arith.constant 0 : i32
    return %arg0, %c0_i32 : i32, i32
  }
  func.func @transform_1(%arg0: i32) -> (i32, i32) {
    %c0_i32 = arith.constant 0 : i32
    %c0_i32_0 = arith.constant 0 : i32
    %c0_i32_1 = arith.constant 0 : i32
    return %c0_i32, %c0_i32_0 : i32, i32
  }
  func.func @transform_2(%arg0: i32) -> (i32, i32) {
    %c0_i32 = arith.constant 0 : i32
    %c0_i32_0 = arith.constant 0 : i32
    return %arg0, %c0_i32 : i32, i32
  }
}

</mosaic_0001>

<llo_original>
// kernel: tpu_custom_call.1
$region0: #{tpu_custom_call.1}
  #allocation0 [shape = 'u32[]', space=smem, size = 0x4, offset = 0x4, fixed_abs, tag = 'smem constant byte address 0x4 - core index']
  #allocation1 [shape = 'u32[144,128]{1,0:T(1,128)}', space=vmem, size = 0x12000, scoped, tag = 'internal scratch']
  %s0 = inlined_call_operand.hbm [shape: f32[64,2048], index: 0, kind: input, shape index: {}]
  %s1 = inlined_call_operand.hbm [shape: f32[1,2048], index: 1, kind: input, shape index: {}]
  %s2 = inlined_call_operand.hbm [shape: f32[64,2048], index: 2, kind: output, shape index: {}]
  %s3 = sld [smem:[#allocation0]]
  $region26: #{tpu_custom_call.1} parent=0
    _
  %s5 = ssub.s32 1, %s3
  %s6 = scalar_select 0, %s5, %s3
  $region1: #{tpu_custom_call.1} parent=0
    #allocation2 [shape = 'u8[524288]{0}', space=vmem, size = 0x80000, scoped, tag = 'input window, operand 0, single buffered']
    #allocation3 [shape = 's32[1]{0}', space=sflag, size = 0x4, scoped, tag = 'scoped memory for tpu_custom_call.1']
    #allocation4 [shape = 's32[1]{0}', space=sflag, size = 0x4, scoped, tag = 'scoped memory for tpu_custom_call.1']
    #allocation5 [shape = 'u8[8192]{0}', space=vmem, size = 0x2000, scoped, tag = 'input window, operand 1, single buffered']
    #allocation6 [shape = 's32[1]{0}', space=sflag, size = 0x4, scoped, tag = 'scoped memory for tpu_custom_call.1']
    #allocation7 [shape = 'u8[524288]{0}', space=vmem, size = 0x80000, scoped, tag = 'output window, operand 0, single buffered']
    %7 = vsyncpa [#allocation3], 0
    %8 = vsyncpa [#allocation6], 0
    %9 = vsyncpa [#allocation4], 0
    // Predicated region
    $region2: #{tpu_custom_call.1} parent=1 // pred_check
      _
    $region3: #{tpu_custom_call.1} parent=1 // pred_check_branch
      %11 = sbr.rel (0) target = $region5
    $region4: #{tpu_custom_call.1} parent=1 // pred_region
      %s13 = ssub.s32 16384, 16384
      %14 = vsyncadd [#allocation3], %s13
      %s15 = sshll.u32 [#allocation2], 4
      %s16 = int_to_ptr.vmem [resolvable:$true] %s15
      %21 = dma.hbm_to_vmem [thread:$0]  %s0, 16384, %s16, [#allocation3], 2048, 2048, 128
    $region5: #{tpu_custom_call.1} parent=1 // pred_fallthru
      _
    // Predicated region
    $region6: #{tpu_custom_call.1} parent=1 // pred_check
      _
    $region7: #{tpu_custom_call.1} parent=1 // pred_check_branch
      %23 = sbr.rel (0) target = $region9
    $region8: #{tpu_custom_call.1} parent=1 // pred_region
      %s25 = ssub.s32 256, 256
      %26 = vsyncadd [#allocation6], %s25
      %s28 = sshll.u32 [#allocation5], 4
      %s29 = int_to_ptr.vmem [resolvable:$true] %s28
      %31 = dma.hbm_to_vmem [thread:$0]  %s1, 256, %s29, [#allocation6]
    $region9: #{tpu_custom_call.1} parent=1 // pred_fallthru
      _
    // Predicated region
    $region10: #{tpu_custom_call.1} parent=1 // pred_check
      _
    $region11: #{tpu_custom_call.1} parent=1 // pred_check_branch
      %33 = sbr.rel (0) target = $region13
    $region12: #{tpu_custom_call.1} parent=1 // pred_region
      %34 = dma.done [#allocation3], 16384
    $region13: #{tpu_custom_call.1} parent=1 // pred_fallthru
      _
    // Predicated region
    $region14: #{tpu_custom_call.1} parent=1 // pred_check
      _
    $region15: #{tpu_custom_call.1} parent=1 // pred_check_branch
      %36 = sbr.rel (0) target = $region17
    $region16: #{tpu_custom_call.1} parent=1 // pred_region
      %37 = dma.done [#allocation6], 256
    $region17: #{tpu_custom_call.1} parent=1 // pred_fallthru
      _
    %v38 = vld [vmem:[#allocation2] sm:$0xff]
    %v39 = vld [vmem:[#allocation2 + $0x8] sm:$0xff]
    %v40 = vld [vmem:[#allocation2 + $0x10] sm:$0xff]
    %v41 = vld [vmem:[#allocation2 + $0x18] sm:$0xff]
    %v42 = vld [vmem:[#allocation2 + $0x20] sm:$0xff]
    %v43 = vld [vmem:[#allocation2 + $0x28] sm:$0xff]
    %v44 = vld [vmem:[#allocation2 + $0x30] sm:$0xff]
    %v45 = vld [vmem:[#allocation2 + $0x38] sm:$0xff]
    %v46 = vld [vmem:[#allocation2 + $0x40] sm:$0xff]
    %v47 = vld [vmem:[#allocation2 + $0x48] sm:$0xff]
    %v48 = vld [vmem:[#allocation2 + $0x50] sm:$0xff]
    %v49 = vld [vmem:[#allocation2 + $0x58] sm:$0xff]
    %v50 = vld [vmem:[#allocation2 + $0x60] sm:$0xff]
    %v51 = vld [vmem:[#allocation2 + $0x68] sm:$0xff]
    %v52 = vld [vmem:[#allocation2 + $0x70] sm:$0xff]
    %v53 = vld [vmem:[#allocation2 + $0x78] sm:$0xff]
    %v54 = vld [vmem:[#allocation2 + $0x80] sm:$0xff]
    %v55 = vld [vmem:[#allocation2 + $0x88] sm:$0xff]
    %v56 = vld [vmem:[#allocation2 + $0x90] sm:$0xff]
    %v57 = vld [vmem:[#allocation2 + $0x98] sm:$0xff]
    %v58 = vld [vmem:[#allocation2 + $0xa0] sm:$0xff]
    %v59 = vld [vmem:[#allocation2 + $0xa8] sm:$0xff]
    %v60 = vld [vmem:[#allocation2 + $0xb0] sm:$0xff]
    %v61 = vld [vmem:[#allocation2 + $0xb8] sm:$0xff]
    %v62 = vld [vmem:[#allocation2 + $0xc0] sm:$0xff]
    %v63 = vld [vmem:[#allocation2 + $0xc8] sm:$0xff]
    %v64 = vld [vmem:[#allocation2 + $0xd0] sm:$0xff]
    %v65 = vld [vmem:[#allocation2 + $0xd8] sm:$0xff]
    %v66 = vld [vmem:[#allocation2 + $0xe0] sm:$0xff]
    %v67 = vld [vmem:[#allocation2 + $0xe8] sm:$0xff]
    %v68 = vld [vmem:[#allocation2 + $0xf0] sm:$0xff]
    %v69 = vld [vmem:[#allocation2 + $0xf8] sm:$0xff]
    %v70 = vld [vmem:[#allocation2 + $0x100] sm:$0xff]
    %v71 = vld [vmem:[#allocation2 + $0x108] sm:$0xff]
    %v72 = vld [vmem:[#allocation2 + $0x110] sm:$0xff]
    %v73 = vld [vmem:[#allocation2 + $0x118] sm:$0xff]
    %v74 = vld [vmem:[#allocation2 + $0x120] sm:$0xff]
    %v75 = vld [vmem:[#allocation2 + $0x128] sm:$0xff]
    %v76 = vld [vmem:[#allocation2 + $0x130] sm:$0xff]
    %v77 = vld [vmem:[#allocation2 + $0x138] sm:$0xff]
    %v78 = vld [vmem:[#allocation2 + $0x140] sm:$0xff]
    %v79 = vld [vmem:[#allocation2 + $0x148] sm:$0xff]
    %v80 = vld [vmem:[#allocation2 + $0x150] sm:$0xff]
    %v81 = vld [vmem:[#allocation2 + $0x158] sm:$0xff]
    %v82 = vld [vmem:[#allocation2 + $0x160] sm:$0xff]
    %v83 = vld [vmem:[#allocation2 + $0x168] sm:$0xff]
    %v84 = vld [vmem:[#allocation2 + $0x170] sm:$0xff]
    %v85 = vld [vmem:[#allocation2 + $0x178] sm:$0xff]
    %v86 = vld [vmem:[#allocation2 + $0x180] sm:$0xff]
    %v87 = vld [vmem:[#allocation2 + $0x188] sm:$0xff]
    %v88 = vld [vmem:[#allocation2 + $0x190] sm:$0xff]
    %v89 = vld [vmem:[#allocation2 + $0x198] sm:$0xff]
    %v90 = vld [vmem:[#allocation2 + $0x1a0] sm:$0xff]
    %v91 = vld [vmem:[#allocation2 + $0x1a8] sm:$0xff]
    %v92 = vld [vmem:[#allocation2 + $0x1b0] sm:$0xff]
    %v93 = vld [vmem:[#allocation2 + $0x1b8] sm:$0xff]
    %v94 = vld [vmem:[#allocation2 + $0x1c0] sm:$0xff]
    %v95 = vld [vmem:[#allocation2 + $0x1c8] sm:$0xff]
    %v96 = vld [vmem:[#allocation2 + $0x1d0] sm:$0xff]
    %v97 = vld [vmem:[#allocation2 + $0x1d8] sm:$0xff]
    %v98 = vld [vmem:[#allocation2 + $0x1e0] sm:$0xff]
    %v99 = vld [vmem:[#allocation2 + $0x1e8] sm:$0xff]
    %v100 = vld [vmem:[#allocation2 + $0x1f0] sm:$0xff]
    %v101 = vld [vmem:[#allocation2 + $0x1f8] sm:$0xff]
    %v102 = vld [vmem:[#allocation2 + $0x200] sm:$0xff]
    %v103 = vld [vmem:[#allocation2 + $0x208] sm:$0xff]
    %v104 = vld [vmem:[#allocation2 + $0x210] sm:$0xff]
    %v105 = vld [vmem:[#allocation2 + $0x218] sm:$0xff]
    %v106 = vld [vmem:[#allocation2 + $0x220] sm:$0xff]
    %v107 = vld [vmem:[#allocation2 + $0x228] sm:$0xff]
    %v108 = vld [vmem:[#allocation2 + $0x230] sm:$0xff]
    %v109 = vld [vmem:[#allocation2 + $0x238] sm:$0xff]
    %v110 = vld [vmem:[#allocation2 + $0x240] sm:$0xff]
    %v111 = vld [vmem:[#allocation2 + $0x248] sm:$0xff]
    %v112 = vld [vmem:[#allocation2 + $0x250] sm:$0xff]
    %v113 = vld [vmem:[#allocation2 + $0x258] sm:$0xff]
    %v114 = vld [vmem:[#allocation2 + $0x260] sm:$0xff]
    %v115 = vld [vmem:[#allocation2 + $0x268] sm:$0xff]
    %v116 = vld [vmem:[#allocation2 + $0x270] sm:$0xff]
    %v117 = vld [vmem:[#allocation2 + $0x278] sm:$0xff]
    %v118 = vld [vmem:[#allocation2 + $0x280] sm:$0xff]
    %v119 = vld [vmem:[#allocation2 + $0x288] sm:$0xff]
    %v120 = vld [vmem:[#allocation2 + $0x290] sm:$0xff]
    %v121 = vld [vmem:[#allocation2 + $0x298] sm:$0xff]
    %v122 = vld [vmem:[#allocation2 + $0x2a0] sm:$0xff]
    %v123 = vld [vmem:[#allocation2 + $0x2a8] sm:$0xff]
    %v124 = vld [vmem:[#allocation2 + $0x2b0] sm:$0xff]
    %v125 = vld [vmem:[#allocation2 + $0x2b8] sm:$0xff]
    %v126 = vld [vmem:[#allocation2 + $0x2c0] sm:$0xff]
    %v127 = vld [vmem:[#allocation2 + $0x2c8] sm:$0xff]
    %v128 = vld [vmem:[#allocation2 + $0x2d0] sm:$0xff]
    %v129 = vld [vmem:[#allocation2 + $0x2d8] sm:$0xff]
    %v130 = vld [vmem:[#allocation2 + $0x2e0] sm:$0xff]
    %v131 = vld [vmem:[#allocation2 + $0x2e8] sm:$0xff]
    %v132 = vld [vmem:[#allocation2 + $0x2f0] sm:$0xff]
    %v133 = vld [vmem:[#allocation2 + $0x2f8] sm:$0xff]
    %v134 = vld [vmem:[#allocation2 + $0x300] sm:$0xff]
    %v135 = vld [vmem:[#allocation2 + $0x308] sm:$0xff]
    %v136 = vld [vmem:[#allocation2 + $0x310] sm:$0xff]
    %v137 = vld [vmem:[#allocation2 + $0x318] sm:$0xff]
    %v138 = vld [vmem:[#allocation2 + $0x320] sm:$0xff]
    %v139 = vld [vmem:[#allocation2 + $0x328] sm:$0xff]
    %v140 = vld [vmem:[#allocation2 + $0x330] sm:$0xff]
    %v141 = vld [vmem:[#allocation2 + $0x338] sm:$0xff]
    %v142 = vld [vmem:[#allocation2 + $0x340] sm:$0xff]
    %v143 = vld [vmem:[#allocation2 + $0x348] sm:$0xff]
    %v144 = vld [vmem:[#allocation2 + $0x350] sm:$0xff]
    %v145 = vld [vmem:[#allocation2 + $0x358] sm:$0xff]
    %v146 = vld [vmem:[#allocation2 + $0x360] sm:$0xff]
    %v147 = vld [vmem:[#allocation2 + $0x368] sm:$0xff]
    %v148 = vld [vmem:[#allocation2 + $0x370] sm:$0xff]
    %v149 = vld [vmem:[#allocation2 + $0x378] sm:$0xff]
    %v150 = vld [vmem:[#allocation2 + $0x380] sm:$0xff]
    %v151 = vld [vmem:[#allocation2 + $0x388] sm:$0xff]
    %v152 = vld [vmem:[#allocation2 + $0x390] sm:$0xff]
    %v153 = vld [vmem:[#allocation2 + $0x398] sm:$0xff]
    %v154 = vld [vmem:[#allocation2 + $0x3a0] sm:$0xff]
    %v155 = vld [vmem:[#allocation2 + $0x3a8] sm:$0xff]
    %v156 = vld [vmem:[#allocation2 + $0x3b0] sm:$0xff]
    %v157 = vld [vmem:[#allocation2 + $0x3b8] sm:$0xff]
    %v158 = vld [vmem:[#allocation2 + $0x3c0] sm:$0xff]
    %v159 = vld [vmem:[#allocation2 + $0x3c8] sm:$0xff]
    %v160 = vld [vmem:[#allocation2 + $0x3d0] sm:$0xff]
    %v161 = vld [vmem:[#allocation2 + $0x3d8] sm:$0xff]
    %v162 = vld [vmem:[#allocation2 + $0x3e0] sm:$0xff]
    %v163 = vld [vmem:[#allocation2 + $0x3e8] sm:$0xff]
    %v164 = vld [vmem:[#allocation2 + $0x3f0] sm:$0xff]
    %v165 = vld [vmem:[#allocation2 + $0x3f8] sm:$0xff]
    %v166 = vld [vmem:[#allocation5] sm:$0xff]
    %v167 = vld [vmem:[#allocation5 + $0x8] sm:$0xff]
    %v170 = vlaneseq
    %v171 = vshrl.u32 %v170, 7
    %v172 = vsub.s32 0, %v171
    %v173 = vrot.slane %v166, %v172
    %v174 = vlaneseq
    %v175 = vshrl.u32 %v174, 7
    %v176 = vsub.s32 1, %v175
    %v177 = vrot.slane %v166, %v176
    %v178 = vlaneseq
    %v179 = vshrl.u32 %v178, 7
    %v180 = vsub.s32 2, %v179
    %v181 = vrot.slane %v166, %v180
    %v182 = vlaneseq
    %v183 = vshrl.u32 %v182, 7
    %v184 = vsub.s32 3, %v183
    %v185 = vrot.slane %v166, %v184
    %v186 = vlaneseq
    %v187 = vshrl.u32 %v186, 7
    %v188 = vsub.s32 4, %v187
    %v189 = vrot.slane %v166, %v188
    %v190 = vlaneseq
    %v191 = vshrl.u32 %v190, 7
    %v192 = vsub.s32 5, %v191
    %v193 = vrot.slane %v166, %v192
    %v194 = vlaneseq
    %v195 = vshrl.u32 %v194, 7
    %v196 = vsub.s32 6, %v195
    %v197 = vrot.slane %v166, %v196
    %v198 = vlaneseq
    %v199 = vshrl.u32 %v198, 7
    %v200 = vsub.s32 7, %v199
    %v201 = vrot.slane %v166, %v200
    %v202 = vlaneseq
    %v203 = vshrl.u32 %v202, 7
    %v204 = vsub.s32 0, %v203
    %v205 = vrot.slane %v167, %v204
    %v206 = vlaneseq
    %v207 = vshrl.u32 %v206, 7
    %v208 = vsub.s32 1, %v207
    %v209 = vrot.slane %v167, %v208
    %v210 = vlaneseq
    %v211 = vshrl.u32 %v210, 7
    %v212 = vsub.s32 2, %v211
    %v213 = vrot.slane %v167, %v212
    %v214 = vlaneseq
    %v215 = vshrl.u32 %v214, 7
    %v216 = vsub.s32 3, %v215
    %v217 = vrot.slane %v167, %v216
    %v218 = vlaneseq
    %v219 = vshrl.u32 %v218, 7
    %v220 = vsub.s32 4, %v219
    %v221 = vrot.slane %v167, %v220
    %v222 = vlaneseq
    %v223 = vshrl.u32 %v222, 7
    %v224 = vsub.s32 5, %v223
    %v225 = vrot.slane %v167, %v224
    %v226 = vlaneseq
    %v227 = vshrl.u32 %v226, 7
    %v228 = vsub.s32 6, %v227
    %v229 = vrot.slane %v167, %v228
    %v230 = vlaneseq
    %v231 = vshrl.u32 %v230, 7
    %v232 = vsub.s32 7, %v231
    %v233 = vrot.slane %v167, %v232
    %v250 = vmax.f32 %v38, %v173
    %v251 = vmax.f32 %v39, %v177
    %v252 = vmax.f32 %v40, %v181
    %v253 = vmax.f32 %v41, %v185
    %v254 = vmax.f32 %v42, %v189
    %v255 = vmax.f32 %v43, %v193
    %v256 = vmax.f32 %v44, %v197
    %v257 = vmax.f32 %v45, %v201
    %v258 = vmax.f32 %v46, %v205
    %v259 = vmax.f32 %v47, %v209
    %v260 = vmax.f32 %v48, %v213
    %v261 = vmax.f32 %v49, %v217
    %v262 = vmax.f32 %v50, %v221
    %v263 = vmax.f32 %v51, %v225
    %v264 = vmax.f32 %v52, %v229
    %v265 = vmax.f32 %v53, %v233
    %v266 = vmax.f32 %v54, %v173
    %v267 = vmax.f32 %v55, %v177
    %v268 = vmax.f32 %v56, %v181
    %v269 = vmax.f32 %v57, %v185
    %v270 = vmax.f32 %v58, %v189
    %v271 = vmax.f32 %v59, %v193
    %v272 = vmax.f32 %v60, %v197
    %v273 = vmax.f32 %v61, %v201
    %v274 = vmax.f32 %v62, %v205
    %v275 = vmax.f32 %v63, %v209
    %v276 = vmax.f32 %v64, %v213
    %v277 = vmax.f32 %v65, %v217
    %v278 = vmax.f32 %v66, %v221
    %v279 = vmax.f32 %v67, %v225
    %v280 = vmax.f32 %v68, %v229
    %v281 = vmax.f32 %v69, %v233
    %v282 = vmax.f32 %v70, %v173
    %v283 = vmax.f32 %v71, %v177
    %v284 = vmax.f32 %v72, %v181
    %v285 = vmax.f32 %v73, %v185
    %v286 = vmax.f32 %v74, %v189
    %v287 = vmax.f32 %v75, %v193
    %v288 = vmax.f32 %v76, %v197
    %v289 = vmax.f32 %v77, %v201
    %v290 = vmax.f32 %v78, %v205
    %v291 = vmax.f32 %v79, %v209
    %v292 = vmax.f32 %v80, %v213
    %v293 = vmax.f32 %v81, %v217
    %v294 = vmax.f32 %v82, %v221
    %v295 = vmax.f32 %v83, %v225
    %v296 = vmax.f32 %v84, %v229
    %v297 = vmax.f32 %v85, %v233
    %v298 = vmax.f32 %v86, %v173
    %v299 = vmax.f32 %v87, %v177
    %v300 = vmax.f32 %v88, %v181
    %v301 = vmax.f32 %v89, %v185
    %v302 = vmax.f32 %v90, %v189
    %v303 = vmax.f32 %v91, %v193
    %v304 = vmax.f32 %v92, %v197
    %v305 = vmax.f32 %v93, %v201
    %v306 = vmax.f32 %v94, %v205
    %v307 = vmax.f32 %v95, %v209
    %v308 = vmax.f32 %v96, %v213
    %v309 = vmax.f32 %v97, %v217
    %v310 = vmax.f32 %v98, %v221
    %v311 = vmax.f32 %v99, %v225
    %v312 = vmax.f32 %v100, %v229
    %v313 = vmax.f32 %v101, %v233
    %v314 = vmax.f32 %v102, %v173
    %v315 = vmax.f32 %v103, %v177
    %v316 = vmax.f32 %v104, %v181
    %v317 = vmax.f32 %v105, %v185
    %v318 = vmax.f32 %v106, %v189
    %v319 = vmax.f32 %v107, %v193
    %v320 = vmax.f32 %v108, %v197
    %v321 = vmax.f32 %v109, %v201
    %v322 = vmax.f32 %v110, %v205
    %v323 = vmax.f32 %v111, %v209
    %v324 = vmax.f32 %v112, %v213
    %v325 = vmax.f32 %v113, %v217
    %v326 = vmax.f32 %v114, %v221
    %v327 = vmax.f32 %v115, %v225
    %v328 = vmax.f32 %v116, %v229
    %v329 = vmax.f32 %v117, %v233
    %v330 = vmax.f32 %v118, %v173
    %v331 = vmax.f32 %v119, %v177
    %v332 = vmax.f32 %v120, %v181
    %v333 = vmax.f32 %v121, %v185
    %v334 = vmax.f32 %v122, %v189
    %v335 = vmax.f32 %v123, %v193
    %v336 = vmax.f32 %v124, %v197
    %v337 = vmax.f32 %v125, %v201
    %v338 = vmax.f32 %v126, %v205
    %v339 = vmax.f32 %v127, %v209
    %v340 = vmax.f32 %v128, %v213
    %v341 = vmax.f32 %v129, %v217
    %v342 = vmax.f32 %v130, %v221
    %v343 = vmax.f32 %v131, %v225
    %v344 = vmax.f32 %v132, %v229
    %v345 = vmax.f32 %v133, %v233
    %v346 = vmax.f32 %v134, %v173
    %v347 = vmax.f32 %v135, %v177
    %v348 = vmax.f32 %v136, %v181
    %v349 = vmax.f32 %v137, %v185
    %v350 = vmax.f32 %v138, %v189
    %v351 = vmax.f32 %v139, %v193
    %v352 = vmax.f32 %v140, %v197
    %v353 = vmax.f32 %v141, %v201
    %v354 = vmax.f32 %v142, %v205
    %v355 = vmax.f32 %v143, %v209
    %v356 = vmax.f32 %v144, %v213
    %v357 = vmax.f32 %v145, %v217
    %v358 = vmax.f32 %v146, %v221
    %v359 = vmax.f32 %v147, %v225
    %v360 = vmax.f32 %v148, %v229
    %v361 = vmax.f32 %v149, %v233
    %v362 = vmax.f32 %v150, %v173
    %v363 = vmax.f32 %v151, %v177
    %v364 = vmax.f32 %v152, %v181
    %v365 = vmax.f32 %v153, %v185
    %v366 = vmax.f32 %v154, %v189
    %v367 = vmax.f32 %v155, %v193
    %v368 = vmax.f32 %v156, %v197
    %v369 = vmax.f32 %v157, %v201
    %v370 = vmax.f32 %v158, %v205
    %v371 = vmax.f32 %v159, %v209
    %v372 = vmax.f32 %v160, %v213
    %v373 = vmax.f32 %v161, %v217
    %v374 = vmax.f32 %v162, %v221
    %v375 = vmax.f32 %v163, %v225
    %v376 = vmax.f32 %v164, %v229
    %v377 = vmax.f32 %v165, %v233
    %378 = vst [vmem:[#allocation7] sm:$0xff] %v250
    %379 = vst [vmem:[#allocation7 + $0x8] sm:$0xff] %v251
    %380 = vst [vmem:[#allocation7 + $0x10] sm:$0xff] %v252
    %381 = vst [vmem:[#allocation7 + $0x18] sm:$0xff] %v253
    %382 = vst [vmem:[#allocation7 + $0x20] sm:$0xff] %v254
    %383 = vst [vmem:[#allocation7 + $0x28] sm:$0xff] %v255
    %384 = vst [vmem:[#allocation7 + $0x30] sm:$0xff] %v256
    %385 = vst [vmem:[#allocation7 + $0x38] sm:$0xff] %v257
    %386 = vst [vmem:[#allocation7 + $0x40] sm:$0xff] %v258
    %387 = vst [vmem:[#allocation7 + $0x48] sm:$0xff] %v259
    %388 = vst [vmem:[#allocation7 + $0x50] sm:$0xff] %v260
    %389 = vst [vmem:[#allocation7 + $0x58] sm:$0xff] %v261
    %390 = vst [vmem:[#allocation7 + $0x60] sm:$0xff] %v262
    %391 = vst [vmem:[#allocation7 + $0x68] sm:$0xff] %v263
    %392 = vst [vmem:[#allocation7 + $0x70] sm:$0xff] %v264
    %393 = vst [vmem:[#allocation7 + $0x78] sm:$0xff] %v265
    %394 = vst [vmem:[#allocation7 + $0x80] sm:$0xff] %v266
    %395 = vst [vmem:[#allocation7 + $0x88] sm:$0xff] %v267
    %396 = vst [vmem:[#allocation7 + $0x90] sm:$0xff] %v268
    %397 = vst [vmem:[#allocation7 + $0x98] sm:$0xff] %v269
    %398 = vst [vmem:[#allocation7 + $0xa0] sm:$0xff] %v270
    %399 = vst [vmem:[#allocation7 + $0xa8] sm:$0xff] %v271
    %400 = vst [vmem:[#allocation7 + $0xb0] sm:$0xff] %v272
    %401 = vst [vmem:[#allocation7 + $0xb8] sm:$0xff] %v273
    %402 = vst [vmem:[#allocation7 + $0xc0] sm:$0xff] %v274
    %403 = vst [vmem:[#allocation7 + $0xc8] sm:$0xff] %v275
    %404 = vst [vmem:[#allocation7 + $0xd0] sm:$0xff] %v276
    %405 = vst [vmem:[#allocation7 + $0xd8] sm:$0xff] %v277
    %406 = vst [vmem:[#allocation7 + $0xe0] sm:$0xff] %v278
    %407 = vst [vmem:[#allocation7 + $0xe8] sm:$0xff] %v279
    %408 = vst [vmem:[#allocation7 + $0xf0] sm:$0xff] %v280
    %409 = vst [vmem:[#allocation7 + $0xf8] sm:$0xff] %v281
    %410 = vst [vmem:[#allocation7 + $0x100] sm:$0xff] %v282
    %411 = vst [vmem:[#allocation7 + $0x108] sm:$0xff] %v283
    %412 = vst [vmem:[#allocation7 + $0x110] sm:$0xff] %v284
    %413 = vst [vmem:[#allocation7 + $0x118] sm:$0xff] %v285
    %414 = vst [vmem:[#allocation7 + $0x120] sm:$0xff] %v286
    %415 = vst [vmem:[#allocation7 + $0x128] sm:$0xff] %v287
    %416 = vst [vmem:[#allocation7 + $0x130] sm:$0xff] %v288
    %417 = vst [vmem:[#allocation7 + $0x138] sm:$0xff] %v289
    %418 = vst [vmem:[#allocation7 + $0x140] sm:$0xff] %v290
    %419 = vst [vmem:[#allocation7 + $0x148] sm:$0xff] %v291
    %420 = vst [vmem:[#allocation7 + $0x150] sm:$0xff] %v292
    %421 = vst [vmem:[#allocation7 + $0x158] sm:$0xff] %v293
    %422 = vst [vmem:[#allocation7 + $0x160] sm:$0xff] %v294
    %423 = vst [vmem:[#allocation7 + $0x168] sm:$0xff] %v295
    %424 = vst [vmem:[#allocation7 + $0x170] sm:$0xff] %v296
    %425 = vst [vmem:[#allocation7 + $0x178] sm:$0xff] %v297
    %426 = vst [vmem:[#allocation7 + $0x180] sm:$0xff] %v298
    %427 = vst [vmem:[#allocation7 + $0x188] sm:$0xff] %v299
    %428 = vst [vmem:[#allocation7 + $0x190] sm:$0xff] %v300
    %429 = vst [vmem:[#allocation7 + $0x198] sm:$0xff] %v301
    %430 = vst [vmem:[#allocation7 + $0x1a0] sm:$0xff] %v302
    %431 = vst [vmem:[#allocation7 + $0x1a8] sm:$0xff] %v303
    %432 = vst [vmem:[#allocation7 + $0x1b0] sm:$0xff] %v304
    %433 = vst [vmem:[#allocation7 + $0x1b8] sm:$0xff] %v305
    %434 = vst [vmem:[#allocation7 + $0x1c0] sm:$0xff] %v306
    %435 = vst [vmem:[#allocation7 + $0x1c8] sm:$0xff] %v307
    %436 = vst [vmem:[#allocation7 + $0x1d0] sm:$0xff] %v308
    %437 = vst [vmem:[#allocation7 + $0x1d8] sm:$0xff] %v309
    %438 = vst [vmem:[#allocation7 + $0x1e0] sm:$0xff] %v310
    %439 = vst [vmem:[#allocation7 + $0x1e8] sm:$0xff] %v311
    %440 = vst [vmem:[#allocation7 + $0x1f0] sm:$0xff] %v312
    %441 = vst [vmem:[#allocation7 + $0x1f8] sm:$0xff] %v313
    %442 = vst [vmem:[#allocation7 + $0x200] sm:$0xff] %v314
    %443 = vst [vmem:[#allocation7 + $0x208] sm:$0xff] %v315
    %444 = vst [vmem:[#allocation7 + $0x210] sm:$0xff] %v316
    %445 = vst [vmem:[#allocation7 + $0x218] sm:$0xff] %v317
    %446 = vst [vmem:[#allocation7 + $0x220] sm:$0xff] %v318
    %447 = vst [vmem:[#allocation7 + $0x228] sm:$0xff] %v319
    %448 = vst [vmem:[#allocation7 + $0x230] sm:$0xff] %v320
    %449 = vst [vmem:[#allocation7 + $0x238] sm:$0xff] %v321
    %450 = vst [vmem:[#allocation7 + $0x240] sm:$0xff] %v322
    %451 = vst [vmem:[#allocation7 + $0x248] sm:$0xff] %v323
    %452 = vst [vmem:[#allocation7 + $0x250] sm:$0xff] %v324
    %453 = vst [vmem:[#allocation7 + $0x258] sm:$0xff] %v325
    %454 = vst [vmem:[#allocation7 + $0x260] sm:$0xff] %v326
    %455 = vst [vmem:[#allocation7 + $0x268] sm:$0xff] %v327
    %456 = vst [vmem:[#allocation7 + $0x270] sm:$0xff] %v328
    %457 = vst [vmem:[#allocation7 + $0x278] sm:$0xff] %v329
    %458 = vst [vmem:[#allocation7 + $0x280] sm:$0xff] %v330
    %459 = vst [vmem:[#allocation7 + $0x288] sm:$0xff] %v331
    %460 = vst [vmem:[#allocation7 + $0x290] sm:$0xff] %v332
    %461 = vst [vmem:[#allocation7 + $0x298] sm:$0xff] %v333
    %462 = vst [vmem:[#allocation7 + $0x2a0] sm:$0xff] %v334
    %463 = vst [vmem:[#allocation7 + $0x2a8] sm:$0xff] %v335
    %464 = vst [vmem:[#allocation7 + $0x2b0] sm:$0xff] %v336
    %465 = vst [vmem:[#allocation7 + $0x2b8] sm:$0xff] %v337
    %466 = vst [vmem:[#allocation7 + $0x2c0] sm:$0xff] %v338
    %467 = vst [vmem:[#allocation7 + $0x2c8] sm:$0xff] %v339
    %468 = vst [vmem:[#allocation7 + $0x2d0] sm:$0xff] %v340
    %469 = vst [vmem:[#allocation7 + $0x2d8] sm:$0xff] %v341
    %470 = vst [vmem:[#allocation7 + $0x2e0] sm:$0xff] %v342
    %471 = vst [vmem:[#allocation7 + $0x2e8] sm:$0xff] %v343
    %472 = vst [vmem:[#allocation7 + $0x2f0] sm:$0xff] %v344
    %473 = vst [vmem:[#allocation7 + $0x2f8] sm:$0xff] %v345
    %474 = vst [vmem:[#allocation7 + $0x300] sm:$0xff] %v346
    %475 = vst [vmem:[#allocation7 + $0x308] sm:$0xff] %v347
    %476 = vst [vmem:[#allocation7 + $0x310] sm:$0xff] %v348
    %477 = vst [vmem:[#allocation7 + $0x318] sm:$0xff] %v349
    %478 = vst [vmem:[#allocation7 + $0x320] sm:$0xff] %v350
    %479 = vst [vmem:[#allocation7 + $0x328] sm:$0xff] %v351
    %480 = vst [vmem:[#allocation7 + $0x330] sm:$0xff] %v352
    %481 = vst [vmem:[#allocation7 + $0x338] sm:$0xff] %v353
    %482 = vst [vmem:[#allocation7 + $0x340] sm:$0xff] %v354
    %483 = vst [vmem:[#allocation7 + $0x348] sm:$0xff] %v355
    %484 = vst [vmem:[#allocation7 + $0x350] sm:$0xff] %v356
    %485 = vst [vmem:[#allocation7 + $0x358] sm:$0xff] %v357
    %486 = vst [vmem:[#allocation7 + $0x360] sm:$0xff] %v358
    %487 = vst [vmem:[#allocation7 + $0x368] sm:$0xff] %v359
    %488 = vst [vmem:[#allocation7 + $0x370] sm:$0xff] %v360
    %489 = vst [vmem:[#allocation7 + $0x378] sm:$0xff] %v361
    %490 = vst [vmem:[#allocation7 + $0x380] sm:$0xff] %v362
    %491 = vst [vmem:[#allocation7 + $0x388] sm:$0xff] %v363
    %492 = vst [vmem:[#allocation7 + $0x390] sm:$0xff] %v364
    %493 = vst [vmem:[#allocation7 + $0x398] sm:$0xff] %v365
    %494 = vst [vmem:[#allocation7 + $0x3a0] sm:$0xff] %v366
    %495 = vst [vmem:[#allocation7 + $0x3a8] sm:$0xff] %v367
    %496 = vst [vmem:[#allocation7 + $0x3b0] sm:$0xff] %v368
    %497 = vst [vmem:[#allocation7 + $0x3b8] sm:$0xff] %v369
    %498 = vst [vmem:[#allocation7 + $0x3c0] sm:$0xff] %v370
    %499 = vst [vmem:[#allocation7 + $0x3c8] sm:$0xff] %v371
    %500 = vst [vmem:[#allocation7 + $0x3d0] sm:$0xff] %v372
    %501 = vst [vmem:[#allocation7 + $0x3d8] sm:$0xff] %v373
    %502 = vst [vmem:[#allocation7 + $0x3e0] sm:$0xff] %v374
    %503 = vst [vmem:[#allocation7 + $0x3e8] sm:$0xff] %v375
    %504 = vst [vmem:[#allocation7 + $0x3f0] sm:$0xff] %v376
    %505 = vst [vmem:[#allocation7 + $0x3f8] sm:$0xff] %v377
    // Predicated region
    $region18: #{tpu_custom_call.1} parent=1 // pred_check
      _
    $region19: #{tpu_custom_call.1} parent=1 // pred_check_branch
      %507 = sbr.rel (0) target = $region21
    $region20: #{tpu_custom_call.1} parent=1 // pred_region
      %s509 = ssub.s32 16384, 16384
      %510 = vsyncadd [#allocation4], %s509
      %s511 = sshll.u32 [#allocation7], 4
      %s512 = int_to_ptr.vmem [resolvable:$true] %s511
      %517 = dma.vmem_to_hbm [thread:$0]  %s512, 16384, %s2, [#allocation4], 2048, 2048, 128
    $region21: #{tpu_custom_call.1} parent=1 // pred_fallthru
      _
    // Predicated region
    $region22: #{tpu_custom_call.1} parent=1 // pred_check
      _
    $region23: #{tpu_custom_call.1} parent=1 // pred_check_branch
      %519 = sbr.rel (0) target = $region25
    $region24: #{tpu_custom_call.1} parent=1 // pred_region
      %520 = dma.done [#allocation4], 16384
    $region25: #{tpu_custom_call.1} parent=1 // pred_fallthru
      _
    %521 = vsyncpa [#allocation3], 1
    %522 = vsyncpa [#allocation6], 1
    %523 = vsyncpa [#allocation4], 1

</llo_original>
